<compile_context>
chip_gen: v6e
topology: v6e:2x2x1
jax: 0.10.0
libtpu: 0.0.40
codegen_flags: <defaults>
</compile_context>

<pallas_src>
import functools

import jax
import jax.numpy as jnp
from jax.experimental import pallas as pl
from jax.experimental.pallas import tpu as pltpu


def _lstm_fc_kernel(x_ref, wih_ref, whh_ref, b_ref, wfc_ref, bfc_ref,
                    out_ref, hs_sc, *, B, T):
    """Fused LSTM recurrence + Linear, single invocation (no grid).

    x_ref:   (T*B, D)    time-major flattened input (row = t*B + b)
    wih_ref: (D, 4H)     W_ih^T
    whh_ref: (H, 4H)     W_hh^T
    b_ref:   (1, 4H)     b_ih + b_hh
    wfc_ref: (H, O_pad)  W_fc^T, zero-padded to a multiple of 128 lanes
    bfc_ref: (1, O_pad)  fc bias, zero-padded
    out_ref: (T*B, O_pad) fc(h_t), time-major rows, lane-dense
    hs_sc:   (T*B, H)    VMEM scratch collecting h_t, time-major rows
    """
    H = whh_ref.shape[0]
    assert hs_sc.shape == (T * B, H)          # loop writes every scratch row
    assert x_ref.shape[0] == T * B

    # --- Preamble (off the serial critical path): one MXU matmul for the
    #     input projection of ALL timesteps, bias folded in once.
    gates_x = (
        jnp.dot(x_ref[...], wih_ref[...], preferred_element_type=jnp.float32)
        + b_ref[...]
    )                                                        # (T*B, 4H)

    # g-lane pre-scaling for the single-sigmoid trick:
    #   tanh(x) = 2 * sigmoid(2x) - 1  on gate lanes [2H, 3H).
    # The 2x is folded once into gates_x and the hoisted W_hh copy, so the
    # per-step loop sees no extra VPU work for it.
    lane = jax.lax.broadcasted_iota(jnp.int32, (1, 4 * H), 1)
    g_mask = (lane >= 2 * H) & (lane < 3 * H)
    pre = jnp.where(g_mask, 2.0, 1.0).astype(jnp.float32)    # (1, 4H)
    gates_x = gates_x * pre
    whh = whh_ref[...] * pre                                 # (H, 4H), loaded once

    h = jnp.zeros((B, H), jnp.float32)
    c = jnp.zeros((B, H), jnp.float32)

    # --- Serial recurrence: fully unrolled static Python loop (T is small).
    #     Per step: 1 MXU matmul (h @ W_hh) + 1 full-width sigmoid + 1 tanh(c).
    for t in range(T):
        gx_t = gates_x[t * B:(t + 1) * B, :]                 # static slice
        gates = gx_t + jnp.dot(h, whh, preferred_element_type=jnp.float32)

        act = jax.nn.sigmoid(gates)                          # single EUP pass (B, 4H)
        i_g = act[:, 0 * H:1 * H]
        f_g = act[:, 1 * H:2 * H]
        g_g = act[:, 2 * H:3 * H] * 2.0 - 1.0                # tanh via sigmoid identity
        o_g = act[:, 3 * H:4 * H]

        c = f_g * c + i_g * g_g
        h = o_g * jnp.tanh(c)                                # second (narrow) EUP pass
        hs_sc[t * B:(t + 1) * B, :] = h                      # static store

    # --- Deferred fc: one matmul + one lane-dense store for all T timesteps.
    out = (
        jnp.dot(hs_sc[...], wfc_ref[...], preferred_element_type=jnp.float32)
        + bfc_ref[...]
    )                                                        # (T*B, O_pad)
    out_ref[...] = out.astype(out_ref.dtype)


def lstm_simple_forward(x, params):
    """x: (B, T, D) float32.  Returns (B, T, output_dim * output_seq_len)."""
    B, T, D = x.shape
    wih_t = params["w_ih_t"]          # (D, 4H)
    whh_t = params["w_hh_t"]          # (H, 4H)
    b = params["b"]                   # (1, 4H)
    wfc_t = params["w_fc_t"]          # (H, O)
    bfc = params["b_fc"]              # (1, O)
    H = whh_t.shape[0]
    O = wfc_t.shape[1]

    # Lane-dense fc output: zero-pad columns to a multiple of 128 so the
    # kernel's final store is an unmasked full-lane slab.
    O_pad = max(128, ((O + 127) // 128) * 128)
    wfc_pad = jnp.zeros((H, O_pad), wfc_t.dtype).at[:, :O].set(wfc_t)
    bfc_pad = jnp.zeros((1, O_pad), bfc.dtype).at[:, :O].set(bfc)

    # Time-major flatten: row = t*B + b (tiny relayout, fused by XLA).
    x_tm = jnp.transpose(x, (1, 0, 2)).reshape(T * B, D)

    kernel = functools.partial(_lstm_fc_kernel, B=B, T=T)

    out_tm = pl.pallas_call(
        kernel,
        out_shape=jax.ShapeDtypeStruct((T * B, O_pad), x.dtype),
        scratch_shapes=[pltpu.VMEM((T * B, H), jnp.float32)],   # h_t collector
    )(x_tm, wih_t, whh_t, b, wfc_pad, bfc_pad)

    # (T*B, O_pad) time-major rows -> (B, T, O) batch-major.
    out_tm = out_tm[:, :O]
    return jnp.transpose(out_tm.reshape(T, B, O), (1, 0, 2))


def make_params(key, input_dim, hidden_dim, output_seq_len, output_dim):
    """Deterministic synthetic parameters matching nn.LSTM / nn.Linear shapes."""
    H, D = hidden_dim, input_dim
    O = output_dim * output_seq_len
    k_lstm = 1.0 / jnp.sqrt(jnp.float32(H))
    k_fc = 1.0 / jnp.sqrt(jnp.float32(D))
    ks = jax.random.split(key, 6)
    w_ih = jax.random.uniform(ks[0], (4 * H, D), jnp.float32, -k_lstm, k_lstm)
    w_hh = jax.random.uniform(ks[1], (4 * H, H), jnp.float32, -k_lstm, k_lstm)
    b_ih = jax.random.uniform(ks[2], (4 * H,), jnp.float32, -k_lstm, k_lstm)
    b_hh = jax.random.uniform(ks[3], (4 * H,), jnp.float32, -k_lstm, k_lstm)
    w_fc = jax.random.uniform(ks[4], (O, D), jnp.float32, -k_fc, k_fc)
    b_fc = jax.random.uniform(ks[5], (O,), jnp.float32, -k_fc, k_fc)
    return {
        "w_ih_t": w_ih.T,                         # (D, 4H)
        "w_hh_t": w_hh.T,                         # (H, 4H)
        "b": (b_ih + b_hh)[None, :],              # (1, 4H)
        "w_fc_t": w_fc.T,                         # (H, O)  (H == D here)
        "b_fc": b_fc[None, :],                    # (1, O)
    }


def _reference_forward(x, params):
    """Pure-JAX reference (lax.scan) for correctness checking."""
    wih_t, whh_t, b = params["w_ih_t"], params["w_hh_t"], params["b"]
    wfc_t, bfc = params["w_fc_t"], params["b_fc"]
    H = whh_t.shape[0]
    B = x.shape[0]

    def step(carry, x_t):
        h, c = carry
        gates = x_t @ wih_t + h @ whh_t + b
        i = jax.nn.sigmoid(gates[:, 0 * H:1 * H])
        f = jax.nn.sigmoid(gates[:, 1 * H:2 * H])
        g = jnp.tanh(gates[:, 2 * H:3 * H])
        o = jax.nn.sigmoid(gates[:, 3 * H:4 * H])
        c = f * c + i * g
        h = o * jnp.tanh(c)
        return (h, c), h @ wfc_t + bfc

    h0 = jnp.zeros((B, H), jnp.float32)
    c0 = jnp.zeros((B, H), jnp.float32)
    _, out = jax.lax.scan(step, (h0, c0), jnp.transpose(x, (1, 0, 2)))
    return jnp.transpose(out, (1, 0, 2))


if __name__ == "__main__":
    # Small shapes consistent with the module's forward:
    input_dim = hidden_dim = 32      # must be equal for the PyTorch fc to apply
    output_seq_len, output_dim = 6, 4
    B, T = 4, 8

    key = jax.random.PRNGKey(0)
    kx, kp = jax.random.split(key)
    x = jax.random.normal(kx, (B, T, input_dim), jnp.float32)
    params = make_params(kp, input_dim, hidden_dim, output_seq_len, output_dim)

    fwd = jax.jit(lstm_simple_forward)
    out = fwd(x, params)
    out = jax.block_until_ready(out)

    ref = _reference_forward(x, params)
    assert out.shape == (B, T, output_dim * output_seq_len)
    assert jnp.allclose(out, ref, atol=1e-4, rtol=1e-4)

    print("KERNEL_OK")
</pallas_src>

<mosaic_0001>
module attributes {stable_mosaic.version = 11 : i64} {
  func.func @_lstm_fc_kernel(%arg0: memref<32x32xf32, #tpu.memory_space<vmem>>, %arg1: memref<32x128xf32, #tpu.memory_space<vmem>>, %arg2: memref<32x128xf32, #tpu.memory_space<vmem>>, %arg3: memref<1x128xf32, #tpu.memory_space<vmem>>, %arg4: memref<32x128xf32, #tpu.memory_space<vmem>>, %arg5: memref<1x128xf32, #tpu.memory_space<vmem>>, %arg6: memref<32x128xf32, #tpu.memory_space<vmem>>, %arg7: memref<32x32xf32, #tpu.memory_space<vmem>>) attributes {dimension_semantics = [], scalar_prefetch = 0 : i64, scratch_operands = 1 : i64, tpu.core_type = #tpu.core_type<tc>} {
    %c0 = arith.constant 0 : index
    %c0_0 = arith.constant 0 : index
    %0 = vector.load %arg0[%c0, %c0_0] : memref<32x32xf32, #tpu.memory_space<vmem>>, vector<32x32xf32>
    %c0_1 = arith.constant 0 : index
    %c0_2 = arith.constant 0 : index
    %1 = vector.load %arg1[%c0_1, %c0_2] : memref<32x128xf32, #tpu.memory_space<vmem>>, vector<32x128xf32>
    %cst = arith.constant dense<0.000000e+00> : vector<32x128xf32>
    %2 = tpu.matmul %0, %1, %cst {dimension_numbers = #tpu.dot_dimension_numbers<[1], [0], [0], [1], [0, 0, 1, 1], [], []>} : vector<32x32xf32>, vector<32x128xf32>, vector<32x128xf32> -> vector<32x128xf32>
    %c0_3 = arith.constant 0 : index
    %c0_4 = arith.constant 0 : index
    %3 = vector.load %arg3[%c0_3, %c0_4] : memref<1x128xf32, #tpu.memory_space<vmem>>, vector<1x128xf32>
    %4 = vector.broadcast %3 : vector<1x128xf32> to vector<32x128xf32>
    %5 = arith.addf %2, %4 : vector<32x128xf32>
    %6 = tpu.iota {dimensions = array<i32: 1>} : vector<1x128xi32>
    %c64_i32 = arith.constant 64 : i32
    %7 = vector.broadcast %c64_i32 : i32 to vector<1x128xi32>
    %8 = arith.cmpi sge, %6, %7 : vector<1x128xi32>
    %c96_i32 = arith.constant 96 : i32
    %9 = vector.broadcast %c96_i32 : i32 to vector<1x128xi32>
    %10 = arith.cmpi slt, %6, %9 : vector<1x128xi32>
    %11 = arith.andi %8, %10 : vector<1x128xi1>
    %cst_5 = arith.constant 2.000000e+00 : f32
    %cst_6 = arith.constant 1.000000e+00 : f32
    %12 = vector.broadcast %cst_5 : f32 to vector<1x128xf32>
    %13 = vector.broadcast %cst_6 : f32 to vector<1x128xf32>
    %14 = arith.select %11, %12, %13 : vector<1x128xi1>, vector<1x128xf32>
    %15 = vector.broadcast %14 : vector<1x128xf32> to vector<32x128xf32>
    %16 = arith.mulf %5, %15 : vector<32x128xf32>
    %c0_7 = arith.constant 0 : index
    %c0_8 = arith.constant 0 : index
    %17 = vector.load %arg2[%c0_7, %c0_8] : memref<32x128xf32, #tpu.memory_space<vmem>>, vector<32x128xf32>
    %18 = vector.broadcast %14 : vector<1x128xf32> to vector<32x128xf32>
    %19 = arith.mulf %17, %18 : vector<32x128xf32>
    %cst_9 = arith.constant 0.000000e+00 : f32
    %20 = vector.broadcast %cst_9 : f32 to vector<4x32xf32>
    %cst_10 = arith.constant 0.000000e+00 : f32
    %21 = vector.broadcast %cst_10 : f32 to vector<4x32xf32>
    %22 = vector.extract_strided_slice %16 {offsets = [0, 0], sizes = [4, 128], strides = [1, 1]} : vector<32x128xf32> to vector<4x128xf32>
    %cst_11 = arith.constant dense<0.000000e+00> : vector<4x128xf32>
    %23 = tpu.matmul %20, %19, %cst_11 {dimension_numbers = #tpu.dot_dimension_numbers<[1], [0], [0], [1], [0, 0, 1, 1], [], []>} : vector<4x32xf32>, vector<32x128xf32>, vector<4x128xf32> -> vector<4x128xf32>
    %24 = arith.addf %22, %23 : vector<4x128xf32>
    %25 = arith.negf %24 : vector<4x128xf32>
    %26 = math.exp %25 : vector<4x128xf32>
    %cst_12 = arith.constant 1.000000e+00 : f32
    %27 = vector.broadcast %cst_12 : f32 to vector<4x128xf32>
    %28 = arith.addf %27, %26 : vector<4x128xf32>
    %29 = arith.divf %27, %28 : vector<4x128xf32>
    %30 = vector.extract_strided_slice %29 {offsets = [0, 0], sizes = [4, 32], strides = [1, 1]} : vector<4x128xf32> to vector<4x32xf32>
    %31 = vector.extract_strided_slice %29 {offsets = [0, 32], sizes = [4, 32], strides = [1, 1]} : vector<4x128xf32> to vector<4x32xf32>
    %32 = vector.extract_strided_slice %29 {offsets = [0, 64], sizes = [4, 32], strides = [1, 1]} : vector<4x128xf32> to vector<4x32xf32>
    %cst_13 = arith.constant 2.000000e+00 : f32
    %33 = vector.broadcast %cst_13 : f32 to vector<4x32xf32>
    %34 = arith.mulf %32, %33 : vector<4x32xf32>
    %cst_14 = arith.constant 1.000000e+00 : f32
    %35 = vector.broadcast %cst_14 : f32 to vector<4x32xf32>
    %36 = arith.subf %34, %35 : vector<4x32xf32>
    %37 = vector.extract_strided_slice %29 {offsets = [0, 96], sizes = [4, 32], strides = [1, 1]} : vector<4x128xf32> to vector<4x32xf32>
    %38 = arith.mulf %31, %21 : vector<4x32xf32>
    %39 = arith.mulf %30, %36 : vector<4x32xf32>
    %40 = arith.addf %38, %39 : vector<4x32xf32>
    %41 = math.tanh %40 : vector<4x32xf32>
    %42 = arith.mulf %37, %41 : vector<4x32xf32>
    %c0_15 = arith.constant 0 : index
    %c0_16 = arith.constant 0 : index
    %43 = vector.load %arg7[%c0_15, %c0_16] : memref<32x32xf32, #tpu.memory_space<vmem>>, vector<4x32xf32>
    tpu.vector_store %arg7[%c0_15, %c0_16], %42 {strides = array<i32>} : memref<32x32xf32, #tpu.memory_space<vmem>>, vector<4x32xf32>,
    %44 = vector.extract_strided_slice %16 {offsets = [4, 0], sizes = [4, 128], strides = [1, 1]} : vector<32x128xf32> to vector<4x128xf32>
    %cst_17 = arith.constant dense<0.000000e+00> : vector<4x128xf32>
    %45 = tpu.matmul %42, %19, %cst_17 {dimension_numbers = #tpu.dot_dimension_numbers<[1], [0], [0], [1], [0, 0, 1, 1], [], []>} : vector<4x32xf32>, vector<32x128xf32>, vector<4x128xf32> -> vector<4x128xf32>
    %46 = arith.addf %44, %45 : vector<4x128xf32>
    %47 = arith.negf %46 : vector<4x128xf32>
    %48 = math.exp %47 : vector<4x128xf32>
    %cst_18 = arith.constant 1.000000e+00 : f32
    %49 = vector.broadcast %cst_18 : f32 to vector<4x128xf32>
    %50 = arith.addf %49, %48 : vector<4x128xf32>
    %51 = arith.divf %49, %50 : vector<4x128xf32>
    %52 = vector.extract_strided_slice %51 {offsets = [0, 0], sizes = [4, 32], strides = [1, 1]} : vector<4x128xf32> to vector<4x32xf32>
    %53 = vector.extract_strided_slice %51 {offsets = [0, 32], sizes = [4, 32], strides = [1, 1]} : vector<4x128xf32> to vector<4x32xf32>
    %54 = vector.extract_strided_slice %51 {offsets = [0, 64], sizes = [4, 32], strides = [1, 1]} : vector<4x128xf32> to vector<4x32xf32>
    %cst_19 = arith.constant 2.000000e+00 : f32
    %55 = vector.broadcast %cst_19 : f32 to vector<4x32xf32>
    %56 = arith.mulf %54, %55 : vector<4x32xf32>
    %cst_20 = arith.constant 1.000000e+00 : f32
    %57 = vector.broadcast %cst_20 : f32 to vector<4x32xf32>
    %58 = arith.subf %56, %57 : vector<4x32xf32>
    %59 = vector.extract_strided_slice %51 {offsets = [0, 96], sizes = [4, 32], strides = [1, 1]} : vector<4x128xf32> to vector<4x32xf32>
    %60 = arith.mulf %53, %40 : vector<4x32xf32>
    %61 = arith.mulf %52, %58 : vector<4x32xf32>
    %62 = arith.addf %60, %61 : vector<4x32xf32>
    %63 = math.tanh %62 : vector<4x32xf32>
    %64 = arith.mulf %59, %63 : vector<4x32xf32>
    %c4 = arith.constant 4 : index
    %c0_21 = arith.constant 0 : index
    %65 = vector.load %arg7[%c4, %c0_21] : memref<32x32xf32, #tpu.memory_space<vmem>>, vector<4x32xf32>
    tpu.vector_store %arg7[%c4, %c0_21], %64 {strides = array<i32>} : memref<32x32xf32, #tpu.memory_space<vmem>>, vector<4x32xf32>,
    %66 = vector.extract_strided_slice %16 {offsets = [8, 0], sizes = [4, 128], strides = [1, 1]} : vector<32x128xf32> to vector<4x128xf32>
    %cst_22 = arith.constant dense<0.000000e+00> : vector<4x128xf32>
    %67 = tpu.matmul %64, %19, %cst_22 {dimension_numbers = #tpu.dot_dimension_numbers<[1], [0], [0], [1], [0, 0, 1, 1], [], []>} : vector<4x32xf32>, vector<32x128xf32>, vector<4x128xf32> -> vector<4x128xf32>
    %68 = arith.addf %66, %67 : vector<4x128xf32>
    %69 = arith.negf %68 : vector<4x128xf32>
    %70 = math.exp %69 : vector<4x128xf32>
    %cst_23 = arith.constant 1.000000e+00 : f32
    %71 = vector.broadcast %cst_23 : f32 to vector<4x128xf32>
    %72 = arith.addf %71, %70 : vector<4x128xf32>
    %73 = arith.divf %71, %72 : vector<4x128xf32>
    %74 = vector.extract_strided_slice %73 {offsets = [0, 0], sizes = [4, 32], strides = [1, 1]} : vector<4x128xf32> to vector<4x32xf32>
    %75 = vector.extract_strided_slice %73 {offsets = [0, 32], sizes = [4, 32], strides = [1, 1]} : vector<4x128xf32> to vector<4x32xf32>
    %76 = vector.extract_strided_slice %73 {offsets = [0, 64], sizes = [4, 32], strides = [1, 1]} : vector<4x128xf32> to vector<4x32xf32>
    %cst_24 = arith.constant 2.000000e+00 : f32
    %77 = vector.broadcast %cst_24 : f32 to vector<4x32xf32>
    %78 = arith.mulf %76, %77 : vector<4x32xf32>
    %cst_25 = arith.constant 1.000000e+00 : f32
    %79 = vector.broadcast %cst_25 : f32 to vector<4x32xf32>
    %80 = arith.subf %78, %79 : vector<4x32xf32>
    %81 = vector.extract_strided_slice %73 {offsets = [0, 96], sizes = [4, 32], strides = [1, 1]} : vector<4x128xf32> to vector<4x32xf32>
    %82 = arith.mulf %75, %62 : vector<4x32xf32>
    %83 = arith.mulf %74, %80 : vector<4x32xf32>
    %84 = arith.addf %82, %83 : vector<4x32xf32>
    %85 = math.tanh %84 : vector<4x32xf32>
    %86 = arith.mulf %81, %85 : vector<4x32xf32>
    %c8 = arith.constant 8 : index
    %c0_26 = arith.constant 0 : index
    %87 = vector.load %arg7[%c8, %c0_26] : memref<32x32xf32, #tpu.memory_space<vmem>>, vector<4x32xf32>
    tpu.vector_store %arg7[%c8, %c0_26], %86 {strides = array<i32>} : memref<32x32xf32, #tpu.memory_space<vmem>>, vector<4x32xf32>,
    %88 = vector.extract_strided_slice %16 {offsets = [12, 0], sizes = [4, 128], strides = [1, 1]} : vector<32x128xf32> to vector<4x128xf32>
    %cst_27 = arith.constant dense<0.000000e+00> : vector<4x128xf32>
    %89 = tpu.matmul %86, %19, %cst_27 {dimension_numbers = #tpu.dot_dimension_numbers<[1], [0], [0], [1], [0, 0, 1, 1], [], []>} : vector<4x32xf32>, vector<32x128xf32>, vector<4x128xf32> -> vector<4x128xf32>
    %90 = arith.addf %88, %89 : vector<4x128xf32>
    %91 = arith.negf %90 : vector<4x128xf32>
    %92 = math.exp %91 : vector<4x128xf32>
    %cst_28 = arith.constant 1.000000e+00 : f32
    %93 = vector.broadcast %cst_28 : f32 to vector<4x128xf32>
    %94 = arith.addf %93, %92 : vector<4x128xf32>
    %95 = arith.divf %93, %94 : vector<4x128xf32>
    %96 = vector.extract_strided_slice %95 {offsets = [0, 0], sizes = [4, 32], strides = [1, 1]} : vector<4x128xf32> to vector<4x32xf32>
    %97 = vector.extract_strided_slice %95 {offsets = [0, 32], sizes = [4, 32], strides = [1, 1]} : vector<4x128xf32> to vector<4x32xf32>
    %98 = vector.extract_strided_slice %95 {offsets = [0, 64], sizes = [4, 32], strides = [1, 1]} : vector<4x128xf32> to vector<4x32xf32>
    %cst_29 = arith.constant 2.000000e+00 : f32
    %99 = vector.broadcast %cst_29 : f32 to vector<4x32xf32>
    %100 = arith.mulf %98, %99 : vector<4x32xf32>
    %cst_30 = arith.constant 1.000000e+00 : f32
    %101 = vector.broadcast %cst_30 : f32 to vector<4x32xf32>
    %102 = arith.subf %100, %101 : vector<4x32xf32>
    %103 = vector.extract_strided_slice %95 {offsets = [0, 96], sizes = [4, 32], strides = [1, 1]} : vector<4x128xf32> to vector<4x32xf32>
    %104 = arith.mulf %97, %84 : vector<4x32xf32>
    %105 = arith.mulf %96, %102 : vector<4x32xf32>
    %106 = arith.addf %104, %105 : vector<4x32xf32>
    %107 = math.tanh %106 : vector<4x32xf32>
    %108 = arith.mulf %103, %107 : vector<4x32xf32>
    %c12 = arith.constant 12 : index
    %c0_31 = arith.constant 0 : index
    %109 = vector.load %arg7[%c12, %c0_31] : memref<32x32xf32, #tpu.memory_space<vmem>>, vector<4x32xf32>
    tpu.vector_store %arg7[%c12, %c0_31], %108 {strides = array<i32>} : memref<32x32xf32, #tpu.memory_space<vmem>>, vector<4x32xf32>,
    %110 = vector.extract_strided_slice %16 {offsets = [16, 0], sizes = [4, 128], strides = [1, 1]} : vector<32x128xf32> to vector<4x128xf32>
    %cst_32 = arith.constant dense<0.000000e+00> : vector<4x128xf32>
    %111 = tpu.matmul %108, %19, %cst_32 {dimension_numbers = #tpu.dot_dimension_numbers<[1], [0], [0], [1], [0, 0, 1, 1], [], []>} : vector<4x32xf32>, vector<32x128xf32>, vector<4x128xf32> -> vector<4x128xf32>
    %112 = arith.addf %110, %111 : vector<4x128xf32>
    %113 = arith.negf %112 : vector<4x128xf32>
    %114 = math.exp %113 : vector<4x128xf32>
    %cst_33 = arith.constant 1.000000e+00 : f32
    %115 = vector.broadcast %cst_33 : f32 to vector<4x128xf32>
    %116 = arith.addf %115, %114 : vector<4x128xf32>
    %117 = arith.divf %115, %116 : vector<4x128xf32>
    %118 = vector.extract_strided_slice %117 {offsets = [0, 0], sizes = [4, 32], strides = [1, 1]} : vector<4x128xf32> to vector<4x32xf32>
    %119 = vector.extract_strided_slice %117 {offsets = [0, 32], sizes = [4, 32], strides = [1, 1]} : vector<4x128xf32> to vector<4x32xf32>
    %120 = vector.extract_strided_slice %117 {offsets = [0, 64], sizes = [4, 32], strides = [1, 1]} : vector<4x128xf32> to vector<4x32xf32>
    %cst_34 = arith.constant 2.000000e+00 : f32
    %121 = vector.broadcast %cst_34 : f32 to vector<4x32xf32>
    %122 = arith.mulf %120, %121 : vector<4x32xf32>
    %cst_35 = arith.constant 1.000000e+00 : f32
    %123 = vector.broadcast %cst_35 : f32 to vector<4x32xf32>
    %124 = arith.subf %122, %123 : vector<4x32xf32>
    %125 = vector.extract_strided_slice %117 {offsets = [0, 96], sizes = [4, 32], strides = [1, 1]} : vector<4x128xf32> to vector<4x32xf32>
    %126 = arith.mulf %119, %106 : vector<4x32xf32>
    %127 = arith.mulf %118, %124 : vector<4x32xf32>
    %128 = arith.addf %126, %127 : vector<4x32xf32>
    %129 = math.tanh %128 : vector<4x32xf32>
    %130 = arith.mulf %125, %129 : vector<4x32xf32>
    %c16 = arith.constant 16 : index
    %c0_36 = arith.constant 0 : index
    %131 = vector.load %arg7[%c16, %c0_36] : memref<32x32xf32, #tpu.memory_space<vmem>>, vector<4x32xf32>
    tpu.vector_store %arg7[%c16, %c0_36], %130 {strides = array<i32>} : memref<32x32xf32, #tpu.memory_space<vmem>>, vector<4x32xf32>,
    %132 = vector.extract_strided_slice %16 {offsets = [20, 0], sizes = [4, 128], strides = [1, 1]} : vector<32x128xf32> to vector<4x128xf32>
    %cst_37 = arith.constant dense<0.000000e+00> : vector<4x128xf32>
    %133 = tpu.matmul %130, %19, %cst_37 {dimension_numbers = #tpu.dot_dimension_numbers<[1], [0], [0], [1], [0, 0, 1, 1], [], []>} : vector<4x32xf32>, vector<32x128xf32>, vector<4x128xf32> -> vector<4x128xf32>
    %134 = arith.addf %132, %133 : vector<4x128xf32>
    %135 = arith.negf %134 : vector<4x128xf32>
    %136 = math.exp %135 : vector<4x128xf32>
    %cst_38 = arith.constant 1.000000e+00 : f32
    %137 = vector.broadcast %cst_38 : f32 to vector<4x128xf32>
    %138 = arith.addf %137, %136 : vector<4x128xf32>
    %139 = arith.divf %137, %138 : vector<4x128xf32>
    %140 = vector.extract_strided_slice %139 {offsets = [0, 0], sizes = [4, 32], strides = [1, 1]} : vector<4x128xf32> to vector<4x32xf32>
    %141 = vector.extract_strided_slice %139 {offsets = [0, 32], sizes = [4, 32], strides = [1, 1]} : vector<4x128xf32> to vector<4x32xf32>
    %142 = vector.extract_strided_slice %139 {offsets = [0, 64], sizes = [4, 32], strides = [1, 1]} : vector<4x128xf32> to vector<4x32xf32>
    %cst_39 = arith.constant 2.000000e+00 : f32
    %143 = vector.broadcast %cst_39 : f32 to vector<4x32xf32>
    %144 = arith.mulf %142, %143 : vector<4x32xf32>
    %cst_40 = arith.constant 1.000000e+00 : f32
    %145 = vector.broadcast %cst_40 : f32 to vector<4x32xf32>
    %146 = arith.subf %144, %145 : vector<4x32xf32>
    %147 = vector.extract_strided_slice %139 {offsets = [0, 96], sizes = [4, 32], strides = [1, 1]} : vector<4x128xf32> to vector<4x32xf32>
    %148 = arith.mulf %141, %128 : vector<4x32xf32>
    %149 = arith.mulf %140, %146 : vector<4x32xf32>
    %150 = arith.addf %148, %149 : vector<4x32xf32>
    %151 = math.tanh %150 : vector<4x32xf32>
    %152 = arith.mulf %147, %151 : vector<4x32xf32>
    %c20 = arith.constant 20 : index
    %c0_41 = arith.constant 0 : index
    %153 = vector.load %arg7[%c20, %c0_41] : memref<32x32xf32, #tpu.memory_space<vmem>>, vector<4x32xf32>
    tpu.vector_store %arg7[%c20, %c0_41], %152 {strides = array<i32>} : memref<32x32xf32, #tpu.memory_space<vmem>>, vector<4x32xf32>,
    %154 = vector.extract_strided_slice %16 {offsets = [24, 0], sizes = [4, 128], strides = [1, 1]} : vector<32x128xf32> to vector<4x128xf32>
    %cst_42 = arith.constant dense<0.000000e+00> : vector<4x128xf32>
    %155 = tpu.matmul %152, %19, %cst_42 {dimension_numbers = #tpu.dot_dimension_numbers<[1], [0], [0], [1], [0, 0, 1, 1], [], []>} : vector<4x32xf32>, vector<32x128xf32>, vector<4x128xf32> -> vector<4x128xf32>
    %156 = arith.addf %154, %155 : vector<4x128xf32>
    %157 = arith.negf %156 : vector<4x128xf32>
    %158 = math.exp %157 : vector<4x128xf32>
    %cst_43 = arith.constant 1.000000e+00 : f32
    %159 = vector.broadcast %cst_43 : f32 to vector<4x128xf32>
    %160 = arith.addf %159, %158 : vector<4x128xf32>
    %161 = arith.divf %159, %160 : vector<4x128xf32>
    %162 = vector.extract_strided_slice %161 {offsets = [0, 0], sizes = [4, 32], strides = [1, 1]} : vector<4x128xf32> to vector<4x32xf32>
    %163 = vector.extract_strided_slice %161 {offsets = [0, 32], sizes = [4, 32], strides = [1, 1]} : vector<4x128xf32> to vector<4x32xf32>
    %164 = vector.extract_strided_slice %161 {offsets = [0, 64], sizes = [4, 32], strides = [1, 1]} : vector<4x128xf32> to vector<4x32xf32>
    %cst_44 = arith.constant 2.000000e+00 : f32
    %165 = vector.broadcast %cst_44 : f32 to vector<4x32xf32>
    %166 = arith.mulf %164, %165 : vector<4x32xf32>
    %cst_45 = arith.constant 1.000000e+00 : f32
    %167 = vector.broadcast %cst_45 : f32 to vector<4x32xf32>
    %168 = arith.subf %166, %167 : vector<4x32xf32>
    %169 = vector.extract_strided_slice %161 {offsets = [0, 96], sizes = [4, 32], strides = [1, 1]} : vector<4x128xf32> to vector<4x32xf32>
    %170 = arith.mulf %163, %150 : vector<4x32xf32>
    %171 = arith.mulf %162, %168 : vector<4x32xf32>
    %172 = arith.addf %170, %171 : vector<4x32xf32>
    %173 = math.tanh %172 : vector<4x32xf32>
    %174 = arith.mulf %169, %173 : vector<4x32xf32>
    %c24 = arith.constant 24 : index
    %c0_46 = arith.constant 0 : index
    %175 = vector.load %arg7[%c24, %c0_46] : memref<32x32xf32, #tpu.memory_space<vmem>>, vector<4x32xf32>
    tpu.vector_store %arg7[%c24, %c0_46], %174 {strides = array<i32>} : memref<32x32xf32, #tpu.memory_space<vmem>>, vector<4x32xf32>,
    %176 = vector.extract_strided_slice %16 {offsets = [28, 0], sizes = [4, 128], strides = [1, 1]} : vector<32x128xf32> to vector<4x128xf32>
    %cst_47 = arith.constant dense<0.000000e+00> : vector<4x128xf32>
    %177 = tpu.matmul %174, %19, %cst_47 {dimension_numbers = #tpu.dot_dimension_numbers<[1], [0], [0], [1], [0, 0, 1, 1], [], []>} : vector<4x32xf32>, vector<32x128xf32>, vector<4x128xf32> -> vector<4x128xf32>
    %178 = arith.addf %176, %177 : vector<4x128xf32>
    %179 = arith.negf %178 : vector<4x128xf32>
    %180 = math.exp %179 : vector<4x128xf32>
    %cst_48 = arith.constant 1.000000e+00 : f32
    %181 = vector.broadcast %cst_48 : f32 to vector<4x128xf32>
    %182 = arith.addf %181, %180 : vector<4x128xf32>
    %183 = arith.divf %181, %182 : vector<4x128xf32>
    %184 = vector.extract_strided_slice %183 {offsets = [0, 0], sizes = [4, 32], strides = [1, 1]} : vector<4x128xf32> to vector<4x32xf32>
    %185 = vector.extract_strided_slice %183 {offsets = [0, 32], sizes = [4, 32], strides = [1, 1]} : vector<4x128xf32> to vector<4x32xf32>
    %186 = vector.extract_strided_slice %183 {offsets = [0, 64], sizes = [4, 32], strides = [1, 1]} : vector<4x128xf32> to vector<4x32xf32>
    %cst_49 = arith.constant 2.000000e+00 : f32
    %187 = vector.broadcast %cst_49 : f32 to vector<4x32xf32>
    %188 = arith.mulf %186, %187 : vector<4x32xf32>
    %cst_50 = arith.constant 1.000000e+00 : f32
    %189 = vector.broadcast %cst_50 : f32 to vector<4x32xf32>
    %190 = arith.subf %188, %189 : vector<4x32xf32>
    %191 = vector.extract_strided_slice %183 {offsets = [0, 96], sizes = [4, 32], strides = [1, 1]} : vector<4x128xf32> to vector<4x32xf32>
    %192 = arith.mulf %185, %172 : vector<4x32xf32>
    %193 = arith.mulf %184, %190 : vector<4x32xf32>
    %194 = arith.addf %192, %193 : vector<4x32xf32>
    %195 = math.tanh %194 : vector<4x32xf32>
    %196 = arith.mulf %191, %195 : vector<4x32xf32>
    %c28 = arith.constant 28 : index
    %c0_51 = arith.constant 0 : index
    %197 = vector.load %arg7[%c28, %c0_51] : memref<32x32xf32, #tpu.memory_space<vmem>>, vector<4x32xf32>
    tpu.vector_store %arg7[%c28, %c0_51], %196 {strides = array<i32>} : memref<32x32xf32, #tpu.memory_space<vmem>>, vector<4x32xf32>,
    %c0_52 = arith.constant 0 : index
    %c0_53 = arith.constant 0 : index
    %198 = vector.load %arg7[%c0_52, %c0_53] : memref<32x32xf32, #tpu.memory_space<vmem>>, vector<32x32xf32>
    %c0_54 = arith.constant 0 : index
    %c0_55 = arith.constant 0 : index
    %199 = vector.load %arg4[%c0_54, %c0_55] : memref<32x128xf32, #tpu.memory_space<vmem>>, vector<32x128xf32>
    %cst_56 = arith.constant dense<0.000000e+00> : vector<32x128xf32>
    %200 = tpu.matmul %198, %199, %cst_56 {dimension_numbers = #tpu.dot_dimension_numbers<[1], [0], [0], [1], [0, 0, 1, 1], [], []>} : vector<32x32xf32>, vector<32x128xf32>, vector<32x128xf32> -> vector<32x128xf32>
    %c0_57 = arith.constant 0 : index
    %c0_58 = arith.constant 0 : index
    %201 = vector.load %arg5[%c0_57, %c0_58] : memref<1x128xf32, #tpu.memory_space<vmem>>, vector<1x128xf32>
    %202 = vector.broadcast %201 : vector<1x128xf32> to vector<32x128xf32>
    %203 = arith.addf %200, %202 : vector<32x128xf32>
    %c0_59 = arith.constant 0 : index
    %c0_60 = arith.constant 0 : index
    %204 = vector.load %arg6[%c0_59, %c0_60] : memref<32x128xf32, #tpu.memory_space<vmem>>, vector<32x128xf32>
    tpu.vector_store %arg6[%c0_59, %c0_60], %203 {strides = array<i32>} : memref<32x128xf32, #tpu.memory_space<vmem>>, vector<32x128xf32>,
    return
  }
}

</mosaic_0001>

<llo_original>
// kernel: lstm_simple_forward.1
$region0: #{lstm_simple_forward.1}
  #allocation0 [shape = 'u32[]', space=smem, size = 0x4, offset = 0x4, fixed_abs, tag = 'smem constant byte address 0x4 - core index']
  #allocation1 [shape = 'u32[144,128]{1,0:T(1,128)}', space=vmem, size = 0x12000, scoped, tag = 'internal scratch']
  #allocation2 [shape = 'f32[32,32]{1,0:T(8,128)}', space=vmem, size = 0x4000, scoped, tag = 'scratch operand']
  %s0 = inlined_call_operand.vmem [shape: f32[32,32], index: 0, kind: input, shape index: {}]
  %s1 = inlined_call_operand.vmem [shape: f32[32,128], index: 1, kind: input, shape index: {}]
  %s2 = inlined_call_operand.vmem [shape: f32[32,128], index: 2, kind: input, shape index: {}]
  %s3 = inlined_call_operand.vmem [shape: f32[1,128], index: 3, kind: input, shape index: {}]
  %s4 = inlined_call_operand.vmem [shape: f32[32,128], index: 4, kind: input, shape index: {}]
  %s5 = inlined_call_operand.vmem [shape: f32[1,128], index: 5, kind: input, shape index: {}]
  %s6 = inlined_call_operand.vmem [shape: f32[32,128], index: 6, kind: output, shape index: {}]
  %s7 = sld [smem:[#allocation0]]
  $region34: #{lstm_simple_forward.1} parent=0
    _
  %s9 = ssub.s32 1, %s7
  %s10 = scalar_select 0, %s9, %s7
  // Predicated region
  $region2: #{lstm_simple_forward.1} parent=0 // pred_check
    _
  $region3: #{lstm_simple_forward.1} parent=0 // pred_check_branch
    %12 = sbr.rel (0) target = $region5
  $region4: #{lstm_simple_forward.1} parent=0 // pred_region
    _
  $region5: #{lstm_simple_forward.1} parent=0 // pred_fallthru
    _
  // Predicated region
  $region6: #{lstm_simple_forward.1} parent=0 // pred_check
    _
  $region7: #{lstm_simple_forward.1} parent=0 // pred_check_branch
    %14 = sbr.rel (0) target = $region9
  $region8: #{lstm_simple_forward.1} parent=0 // pred_region
    _
  $region9: #{lstm_simple_forward.1} parent=0 // pred_fallthru
    _
  // Predicated region
  $region10: #{lstm_simple_forward.1} parent=0 // pred_check
    _
  $region11: #{lstm_simple_forward.1} parent=0 // pred_check_branch
    %16 = sbr.rel (0) target = $region13
  $region12: #{lstm_simple_forward.1} parent=0 // pred_region
    _
  $region13: #{lstm_simple_forward.1} parent=0 // pred_fallthru
    _
  // Predicated region
  $region14: #{lstm_simple_forward.1} parent=0 // pred_check
    _
  $region15: #{lstm_simple_forward.1} parent=0 // pred_check_branch
    %18 = sbr.rel (0) target = $region17
  $region16: #{lstm_simple_forward.1} parent=0 // pred_region
    _
  $region17: #{lstm_simple_forward.1} parent=0 // pred_fallthru
    _
  // Predicated region
  $region18: #{lstm_simple_forward.1} parent=0 // pred_check
    _
  $region19: #{lstm_simple_forward.1} parent=0 // pred_check_branch
    %20 = sbr.rel (0) target = $region21
  $region20: #{lstm_simple_forward.1} parent=0 // pred_region
    _
  $region21: #{lstm_simple_forward.1} parent=0 // pred_fallthru
    _
  // Predicated region
  $region22: #{lstm_simple_forward.1} parent=0 // pred_check
    _
  $region23: #{lstm_simple_forward.1} parent=0 // pred_check_branch
    %22 = sbr.rel (0) target = $region25
  $region24: #{lstm_simple_forward.1} parent=0 // pred_region
    _
  $region25: #{lstm_simple_forward.1} parent=0 // pred_fallthru
    _
  %v23 = vld [vmem:[%s0] sm:$0xff]
  %v24 = vld [vmem:[%s0 + $0x8] sm:$0xff]
  %v25 = vld [vmem:[%s0 + $0x10] sm:$0xff]
  %v26 = vld [vmem:[%s0 + $0x18] sm:$0xff]
  %v27 = vld [vmem:[%s1] sm:$0xff]
  %v28 = vld [vmem:[%s1 + $0x8] sm:$0xff]
  %v29 = vld [vmem:[%s1 + $0x10] sm:$0xff]
  %v30 = vld [vmem:[%s1 + $0x18] sm:$0xff]
  %v31 = vld [vmem:[%s3] sm:$0x1]
  %v33 = vlaneseq
  %v34 = vshrl.u32 %v33, 7
  %v35 = vsub.s32 0, %v34
  %v36 = vrot.slane %v31, %v35
  %vm38 = vcmask 261120
  %v40 = vsel %vm38, %v23, 0
  %v43 = vsel %vm38, %v24, 0
  %v46 = vsel %vm38, %v25, 0
  %v49 = vsel %vm38, %v26, 0
  %51 = vmatprep.subr.mxu0 0.0
  %52 = vmatpush1.msra.mxu0 0.0
  %53 = vmatprep.subr.mxu0 0.0
  %54 = vmatpush1.msra.mxu0 0.0
  %55 = vmatprep.subr.mxu0 0.0
  %56 = vmatpush1.msra.mxu0 0.0
  %57 = vmatprep.subr.mxu0 0.0
  %58 = vmatpush1.msra.mxu0 0.0
  %59 = vmatprep.subr.mxu0 0.0
  %60 = vmatpush1.msra.mxu0 0.0
  %61 = vmatprep.subr.mxu0 0.0
  %62 = vmatpush1.msra.mxu0 0.0
  %63 = vmatprep.subr.mxu0 0.0
  %64 = vmatpush1.msra.mxu0 0.0
  %65 = vmatprep.subr.mxu0 0.0
  %66 = vmatpush1.msra.mxu0 0.0
  %67 = vmatprep.subr.mxu0 0.0
  %68 = vmatpush1.msra.mxu0 0.0
  %69 = vmatprep.subr.mxu0 0.0
  %70 = vmatpush1.msra.mxu0 0.0
  %71 = vmatprep.subr.mxu0 0.0
  %72 = vmatpush1.msra.mxu0 0.0
  %73 = vmatprep.subr.mxu0 0.0
  %74 = vmatpush1.msra.mxu0 0.0
  %75 = vmatprep.subr.mxu0 0.0
  %76 = vmatpush1.msra.mxu0 %v30
  %77 = vmatprep.subr.mxu0 0.0
  %78 = vmatpush1.msra.mxu0 %v29
  %79 = vmatprep.subr.mxu0 0.0
  %80 = vmatpush1.msra.mxu0 %v28
  %81 = vmatprep.subr.mxu0 0.0
  %82 = vmatpush1.msra.mxu0 %v27
  %83 = vmatprep.subr.mxu0 0.0
  %84 = vmatpush2.msra.mxu0 0.0
  %85 = vmatprep.subr.mxu0 0.0
  %86 = vmatpush2.msra.mxu0 0.0
  %87 = vmatprep.subr.mxu0 0.0
  %88 = vmatpush2.msra.mxu0 0.0
  %89 = vmatprep.subr.mxu0 0.0
  %90 = vmatpush2.msra.mxu0 0.0
  %91 = vmatprep.subr.mxu0 0.0
  %92 = vmatpush2.msra.mxu0 0.0
  %93 = vmatprep.subr.mxu0 0.0
  %94 = vmatpush2.msra.mxu0 0.0
  %95 = vmatprep.subr.mxu0 0.0
  %96 = vmatpush2.msra.mxu0 0.0
  %97 = vmatprep.subr.mxu0 0.0
  %98 = vmatpush2.msra.mxu0 0.0
  %99 = vmatprep.subr.mxu0 0.0
  %100 = vmatpush2.msra.mxu0 0.0
  %101 = vmatprep.subr.mxu0 0.0
  %102 = vmatpush2.msra.mxu0 0.0
  %103 = vmatprep.subr.mxu0 0.0
  %104 = vmatpush2.msra.mxu0 0.0
  %105 = vmatprep.subr.mxu0 0.0
  %106 = vmatpush2.msra.mxu0 0.0
  %107 = vmatprep.subr.mxu0 0.0
  %108 = vmatpush2.msra.mxu0 0.0
  %109 = vmatprep.subr.mxu0 0.0
  %110 = vmatpush2.msra.mxu0 0.0
  %111 = vmatprep.subr.mxu0 0.0
  %112 = vmatpush2.msra.mxu0 0.0
  %113 = vmatprep.subr.mxu0 0.0
  %114 = vmatpush2.msra.mxu0 0.0
  %115 = vmatprep.mubr.f32.mxu0 0.0
  %116 = vmatmul.mubr.f32.gmra.mxu0 %v40
  %v117 = vpop.f32.mrf.mxu0
  %v118 = vadd.f32 %v36, %v117
  %v119 = vpop.f32.mrf.mxu0
  %120 = vmatprep.mubr.f32.mxu0 0.0
  %121 = vmatmul.mubr.f32.gmra.mxu0 %v43
  %v122 = vpop.f32.mrf.mxu0
  %v123 = vadd.f32 %v36, %v122
  %v124 = vpop.f32.mrf.mxu0
  %125 = vmatprep.mubr.f32.mxu0 0.0
  %126 = vmatmul.mubr.f32.gmra.mxu0 %v46
  %v127 = vpop.f32.mrf.mxu0
  %v128 = vadd.f32 %v36, %v127
  %v129 = vpop.f32.mrf.mxu0
  %130 = vmatprep.mubr.f32.mxu0 0.0
  %131 = vmatmul.mubr.f32.gmra.mxu0 %v49
  %v132 = vpop.f32.mrf.mxu0
  %v133 = vadd.f32 %v36, %v132
  %v134 = vpop.f32.mrf.mxu0
  %135 = vdwg.mxu0
  %v136 = vlaneseq
  %v137 = vand.u32 %v136, 127
  %vm138 = vcmp.ge.s32.totalorder %v137, 64
  %vm139 = vcmp.lt.s32.totalorder %v137, 96
  %vm140 = vmand %vm138, %vm139
  %v141 = vsel %vm140, 2.0, 1.0
  %v142 = vmul.f32 %v118, %v141
  %v143 = vmul.f32 %v123, %v141
  %v144 = vmul.f32 %v128, %v141
  %v145 = vmul.f32 %v133, %v141
  %v146 = vld [vmem:[%s2] sm:$0xff]
  %v147 = vld [vmem:[%s2 + $0x8] sm:$0xff]
  %v148 = vld [vmem:[%s2 + $0x10] sm:$0xff]
  %v149 = vld [vmem:[%s2 + $0x18] sm:$0xff]
  %v150 = vmul.f32 %v146, %v141
  %v151 = vmul.f32 %v147, %v141
  %v152 = vmul.f32 %v148, %v141
  %v153 = vmul.f32 %v149, %v141
  %v155 = vsel %vm38, 0.0, 0
  %157 = vmatprep.subr.mxu0 0.0
  %158 = vmatpush1.msra.mxu0 0.0
  %159 = vmatprep.subr.mxu0 0.0
  %160 = vmatpush1.msra.mxu0 0.0
  %161 = vmatprep.subr.mxu0 0.0
  %162 = vmatpush1.msra.mxu0 0.0
  %163 = vmatprep.subr.mxu0 0.0
  %164 = vmatpush1.msra.mxu0 0.0
  %165 = vmatprep.subr.mxu0 0.0
  %166 = vmatpush1.msra.mxu0 0.0
  %167 = vmatprep.subr.mxu0 0.0
  %168 = vmatpush1.msra.mxu0 0.0
  %169 = vmatprep.subr.mxu0 0.0
  %170 = vmatpush1.msra.mxu0 0.0
  %171 = vmatprep.subr.mxu0 0.0
  %172 = vmatpush1.msra.mxu0 0.0
  %173 = vmatprep.subr.mxu0 0.0
  %174 = vmatpush1.msra.mxu0 0.0
  %175 = vmatprep.subr.mxu0 0.0
  %176 = vmatpush1.msra.mxu0 0.0
  %177 = vmatprep.subr.mxu0 0.0
  %178 = vmatpush1.msra.mxu0 0.0
  %179 = vmatprep.subr.mxu0 0.0
  %180 = vmatpush1.msra.mxu0 0.0
  %181 = vmatprep.subr.mxu0 0.0
  %182 = vmatpush1.msra.mxu0 %v153
  %183 = vmatprep.subr.mxu0 0.0
  %184 = vmatpush1.msra.mxu0 %v152
  %185 = vmatprep.subr.mxu0 0.0
  %186 = vmatpush1.msra.mxu0 %v151
  %187 = vmatprep.subr.mxu0 0.0
  %188 = vmatpush1.msra.mxu0 %v150
  %189 = vmatprep.subr.mxu0 0.0
  %190 = vmatpush2.msra.mxu0 0.0
  %191 = vmatprep.subr.mxu0 0.0
  %192 = vmatpush2.msra.mxu0 0.0
  %193 = vmatprep.subr.mxu0 0.0
  %194 = vmatpush2.msra.mxu0 0.0
  %195 = vmatprep.subr.mxu0 0.0
  %196 = vmatpush2.msra.mxu0 0.0
  %197 = vmatprep.subr.mxu0 0.0
  %198 = vmatpush2.msra.mxu0 0.0
  %199 = vmatprep.subr.mxu0 0.0
  %200 = vmatpush2.msra.mxu0 0.0
  %201 = vmatprep.subr.mxu0 0.0
  %202 = vmatpush2.msra.mxu0 0.0
  %203 = vmatprep.subr.mxu0 0.0
  %204 = vmatpush2.msra.mxu0 0.0
  %205 = vmatprep.subr.mxu0 0.0
  %206 = vmatpush2.msra.mxu0 0.0
  %207 = vmatprep.subr.mxu0 0.0
  %208 = vmatpush2.msra.mxu0 0.0
  %209 = vmatprep.subr.mxu0 0.0
  %210 = vmatpush2.msra.mxu0 0.0
  %211 = vmatprep.subr.mxu0 0.0
  %212 = vmatpush2.msra.mxu0 0.0
  %213 = vmatprep.subr.mxu0 0.0
  %214 = vmatpush2.msra.mxu0 0.0
  %215 = vmatprep.subr.mxu0 0.0
  %216 = vmatpush2.msra.mxu0 0.0
  %217 = vmatprep.subr.mxu0 0.0
  %218 = vmatpush2.msra.mxu0 0.0
  %219 = vmatprep.subr.mxu0 0.0
  %220 = vmatpush2.msra.mxu0 0.0
  %221 = vmatprep.mubr.f32.mxu0 0.0
  %222 = vmatmul.mubr.f32.gmra.mxu0 %v155
  %v223 = vpop.f32.mrf.mxu0
  %v224 = vadd.f32 0.0, %v223
  %v225 = vpop.f32.mrf.mxu0
  %226 = vdwg.mxu0
  %v227 = vadd.f32 %v142, %v224
  %v228 = vxor.u32 %v227, 2147483648
  %v229 = vmul.f32 %v228, 1.442695
  %v230 = vpow.pop %v229
  %v231 = vadd.f32 %v230, 1.0
  %v232 = vrcp.pop %v231
  %v233 = vmul.f32 1.0, %v232
  %v234 = vmul.f32 %v233, 2.0
  %v235 = vsub.f32 %v234, 1.0
  %v236 = vmul.f32 %v233, 0.0
  %238 = vrot.lane.b32.xlu0 %v235, 64
  %v239 = vpop.permute.xlu0 %238
  %v241 = vmul.f32 %v233, %v239
  %243 = vrot.lane.b32.xlu0 %v241, 32
  %v244 = vpop.permute.xlu0 %243
  %v246 = vadd.f32 %v236, %v244
  %v247 = vtanh.pop %v246
  %249 = vrot.lane.b32.xlu0 %v247, 64
  %v250 = vpop.permute.xlu0 %249
  %v252 = vmul.f32 %v233, %v250
  %254 = vrot.lane.b32.xlu0 %v252, 32
  %v255 = vpop.permute.xlu0 %254
  %vm257 = vcmask 257024
  %258 = vst.msk [vmem:[#allocation2] sm:$0xf] %vm257, %v255
  %v259 = vsel %vm38, %v255, 0
  %261 = vmatprep.subr.mxu0 0.0
  %262 = vmatpush1.msra.mxu0 0.0
  %263 = vmatprep.subr.mxu0 0.0
  %264 = vmatpush1.msra.mxu0 0.0
  %265 = vmatprep.subr.mxu0 0.0
  %266 = vmatpush1.msra.mxu0 0.0
  %267 = vmatprep.subr.mxu0 0.0
  %268 = vmatpush1.msra.mxu0 0.0
  %269 = vmatprep.subr.mxu0 0.0
  %270 = vmatpush1.msra.mxu0 0.0
  %271 = vmatprep.subr.mxu0 0.0
  %272 = vmatpush1.msra.mxu0 0.0
  %273 = vmatprep.subr.mxu0 0.0
  %274 = vmatpush1.msra.mxu0 0.0
  %275 = vmatprep.subr.mxu0 0.0
  %276 = vmatpush1.msra.mxu0 0.0
  %277 = vmatprep.subr.mxu0 0.0
  %278 = vmatpush1.msra.mxu0 0.0
  %279 = vmatprep.subr.mxu0 0.0
  %280 = vmatpush1.msra.mxu0 0.0
  %281 = vmatprep.subr.mxu0 0.0
  %282 = vmatpush1.msra.mxu0 0.0
  %283 = vmatprep.subr.mxu0 0.0
  %284 = vmatpush1.msra.mxu0 0.0
  %285 = vmatprep.subr.mxu0 0.0
  %286 = vmatpush1.msra.mxu0 %v153
  %287 = vmatprep.subr.mxu0 0.0
  %288 = vmatpush1.msra.mxu0 %v152
  %289 = vmatprep.subr.mxu0 0.0
  %290 = vmatpush1.msra.mxu0 %v151
  %291 = vmatprep.subr.mxu0 0.0
  %292 = vmatpush1.msra.mxu0 %v150
  %293 = vmatprep.subr.mxu0 0.0
  %294 = vmatpush2.msra.mxu0 0.0
  %295 = vmatprep.subr.mxu0 0.0
  %296 = vmatpush2.msra.mxu0 0.0
  %297 = vmatprep.subr.mxu0 0.0
  %298 = vmatpush2.msra.mxu0 0.0
  %299 = vmatprep.subr.mxu0 0.0
  %300 = vmatpush2.msra.mxu0 0.0
  %301 = vmatprep.subr.mxu0 0.0
  %302 = vmatpush2.msra.mxu0 0.0
  %303 = vmatprep.subr.mxu0 0.0
  %304 = vmatpush2.msra.mxu0 0.0
  %305 = vmatprep.subr.mxu0 0.0
  %306 = vmatpush2.msra.mxu0 0.0
  %307 = vmatprep.subr.mxu0 0.0
  %308 = vmatpush2.msra.mxu0 0.0
  %309 = vmatprep.subr.mxu0 0.0
  %310 = vmatpush2.msra.mxu0 0.0
  %311 = vmatprep.subr.mxu0 0.0
  %312 = vmatpush2.msra.mxu0 0.0
  %313 = vmatprep.subr.mxu0 0.0
  %314 = vmatpush2.msra.mxu0 0.0
  %315 = vmatprep.subr.mxu0 0.0
  %316 = vmatpush2.msra.mxu0 0.0
  %317 = vmatprep.subr.mxu0 0.0
  %318 = vmatpush2.msra.mxu0 0.0
  %319 = vmatprep.subr.mxu0 0.0
  %320 = vmatpush2.msra.mxu0 0.0
  %321 = vmatprep.subr.mxu0 0.0
  %322 = vmatpush2.msra.mxu0 0.0
  %323 = vmatprep.subr.mxu0 0.0
  %324 = vmatpush2.msra.mxu0 0.0
  %325 = vmatprep.mubr.f32.mxu0 0.0
  %326 = vmatmul.mubr.f32.gmra.mxu0 %v259
  %v327 = vpop.f32.mrf.mxu0
  %v328 = vadd.f32 0.0, %v327
  %v329 = vpop.f32.mrf.mxu0
  %330 = vdwg.mxu0
  %v332 = vrot.slane %v328, 4
  %v334 = vadd.f32 %v142, %v332
  %v335 = vxor.u32 %v334, 2147483648
  %v336 = vmul.f32 %v335, 1.442695
  %v337 = vpow.pop %v336
  %v338 = vadd.f32 %v337, 1.0
  %v339 = vrcp.pop %v338
  %v340 = vmul.f32 1.0, %v339
  %v341 = vmul.f32 %v340, 2.0
  %v342 = vsub.f32 %v341, 1.0
  %v344 = vrot.slane %v246, 4
  %v346 = vmul.f32 %v340, %v344
  %348 = vrot.lane.b32.xlu0 %v342, 64
  %v349 = vpop.permute.xlu0 %348
  %v351 = vmul.f32 %v340, %v349
  %353 = vrot.lane.b32.xlu0 %v351, 32
  %v354 = vpop.permute.xlu0 %353
  %v356 = vadd.f32 %v346, %v354
  %v357 = vtanh.pop %v356
  %359 = vrot.lane.b32.xlu0 %v357, 64
  %v360 = vpop.permute.xlu0 %359
  %v362 = vmul.f32 %v340, %v360
  %364 = vrot.lane.b32.xlu0 %v362, 32
  %v365 = vpop.permute.xlu0 %364
  %vm367 = vcmask 261124
  %368 = vst.msk [vmem:[#allocation2] sm:$0xf0] %vm367, %v365
  %v369 = vrot.slane %v362, 4
  %370 = vrot.lane.b32.xlu0 %v369, 32
  %v371 = vpop.permute.xlu0 %370
  %v372 = vsel %vm38, %v371, 0
  %374 = vmatprep.subr.mxu0 0.0
  %375 = vmatpush1.msra.mxu0 0.0
  %376 = vmatprep.subr.mxu0 0.0
  %377 = vmatpush1.msra.mxu0 0.0
  %378 = vmatprep.subr.mxu0 0.0
  %379 = vmatpush1.msra.mxu0 0.0
  %380 = vmatprep.subr.mxu0 0.0
  %381 = vmatpush1.msra.mxu0 0.0
  %382 = vmatprep.subr.mxu0 0.0
  %383 = vmatpush1.msra.mxu0 0.0
  %384 = vmatprep.subr.mxu0 0.0
  %385 = vmatpush1.msra.mxu0 0.0
  %386 = vmatprep.subr.mxu0 0.0
  %387 = vmatpush1.msra.mxu0 0.0
  %388 = vmatprep.subr.mxu0 0.0
  %389 = vmatpush1.msra.mxu0 0.0
  %390 = vmatprep.subr.mxu0 0.0
  %391 = vmatpush1.msra.mxu0 0.0
  %392 = vmatprep.subr.mxu0 0.0
  %393 = vmatpush1.msra.mxu0 0.0
  %394 = vmatprep.subr.mxu0 0.0
  %395 = vmatpush1.msra.mxu0 0.0
  %396 = vmatprep.subr.mxu0 0.0
  %397 = vmatpush1.msra.mxu0 0.0
  %398 = vmatprep.subr.mxu0 0.0
  %399 = vmatpush1.msra.mxu0 %v153
  %400 = vmatprep.subr.mxu0 0.0
  %401 = vmatpush1.msra.mxu0 %v152
  %402 = vmatprep.subr.mxu0 0.0
  %403 = vmatpush1.msra.mxu0 %v151
  %404 = vmatprep.subr.mxu0 0.0
  %405 = vmatpush1.msra.mxu0 %v150
  %406 = vmatprep.subr.mxu0 0.0
  %407 = vmatpush2.msra.mxu0 0.0
  %408 = vmatprep.subr.mxu0 0.0
  %409 = vmatpush2.msra.mxu0 0.0
  %410 = vmatprep.subr.mxu0 0.0
  %411 = vmatpush2.msra.mxu0 0.0
  %412 = vmatprep.subr.mxu0 0.0
  %413 = vmatpush2.msra.mxu0 0.0
  %414 = vmatprep.subr.mxu0 0.0
  %415 = vmatpush2.msra.mxu0 0.0
  %416 = vmatprep.subr.mxu0 0.0
  %417 = vmatpush2.msra.mxu0 0.0
  %418 = vmatprep.subr.mxu0 0.0
  %419 = vmatpush2.msra.mxu0 0.0
  %420 = vmatprep.subr.mxu0 0.0
  %421 = vmatpush2.msra.mxu0 0.0
  %422 = vmatprep.subr.mxu0 0.0
  %423 = vmatpush2.msra.mxu0 0.0
  %424 = vmatprep.subr.mxu0 0.0
  %425 = vmatpush2.msra.mxu0 0.0
  %426 = vmatprep.subr.mxu0 0.0
  %427 = vmatpush2.msra.mxu0 0.0
  %428 = vmatprep.subr.mxu0 0.0
  %429 = vmatpush2.msra.mxu0 0.0
  %430 = vmatprep.subr.mxu0 0.0
  %431 = vmatpush2.msra.mxu0 0.0
  %432 = vmatprep.subr.mxu0 0.0
  %433 = vmatpush2.msra.mxu0 0.0
  %434 = vmatprep.subr.mxu0 0.0
  %435 = vmatpush2.msra.mxu0 0.0
  %436 = vmatprep.subr.mxu0 0.0
  %437 = vmatpush2.msra.mxu0 0.0
  %438 = vmatprep.mubr.f32.mxu0 0.0
  %439 = vmatmul.mubr.f32.gmra.mxu0 %v372
  %v440 = vpop.f32.mrf.mxu0
  %v441 = vadd.f32 0.0, %v440
  %v442 = vpop.f32.mrf.mxu0
  %443 = vdwg.mxu0
  %v444 = vadd.f32 %v143, %v441
  %v445 = vxor.u32 %v444, 2147483648
  %v446 = vmul.f32 %v445, 1.442695
  %v447 = vpow.pop %v446
  %v448 = vadd.f32 %v447, 1.0
  %v449 = vrcp.pop %v448
  %v450 = vmul.f32 1.0, %v449
  %v451 = vmul.f32 %v450, 2.0
  %v452 = vsub.f32 %v451, 1.0
  %v454 = vrot.slane %v356, 4
  %v456 = vmul.f32 %v450, %v454
  %458 = vrot.lane.b32.xlu0 %v452, 64
  %v459 = vpop.permute.xlu0 %458
  %v461 = vmul.f32 %v450, %v459
  %463 = vrot.lane.b32.xlu0 %v461, 32
  %v464 = vpop.permute.xlu0 %463
  %v466 = vadd.f32 %v456, %v464
  %v467 = vtanh.pop %v466
  %469 = vrot.lane.b32.xlu0 %v467, 64
  %v470 = vpop.permute.xlu0 %469
  %v472 = vmul.f32 %v450, %v470
  %474 = vrot.lane.b32.xlu0 %v472, 32
  %v475 = vpop.permute.xlu0 %474
  %477 = vst.msk [vmem:[#allocation2 + $0x8] sm:$0xf] %vm257, %v475
  %v478 = vsel %vm38, %v475, 0
  %480 = vmatprep.subr.mxu0 0.0
  %481 = vmatpush1.msra.mxu0 0.0
  %482 = vmatprep.subr.mxu0 0.0
  %483 = vmatpush1.msra.mxu0 0.0
  %484 = vmatprep.subr.mxu0 0.0
  %485 = vmatpush1.msra.mxu0 0.0
  %486 = vmatprep.subr.mxu0 0.0
  %487 = vmatpush1.msra.mxu0 0.0
  %488 = vmatprep.subr.mxu0 0.0
  %489 = vmatpush1.msra.mxu0 0.0
  %490 = vmatprep.subr.mxu0 0.0
  %491 = vmatpush1.msra.mxu0 0.0
  %492 = vmatprep.subr.mxu0 0.0
  %493 = vmatpush1.msra.mxu0 0.0
  %494 = vmatprep.subr.mxu0 0.0
  %495 = vmatpush1.msra.mxu0 0.0
  %496 = vmatprep.subr.mxu0 0.0
  %497 = vmatpush1.msra.mxu0 0.0
  %498 = vmatprep.subr.mxu0 0.0
  %499 = vmatpush1.msra.mxu0 0.0
  %500 = vmatprep.subr.mxu0 0.0
  %501 = vmatpush1.msra.mxu0 0.0
  %502 = vmatprep.subr.mxu0 0.0
  %503 = vmatpush1.msra.mxu0 0.0
  %504 = vmatprep.subr.mxu0 0.0
  %505 = vmatpush1.msra.mxu0 %v153
  %506 = vmatprep.subr.mxu0 0.0
  %507 = vmatpush1.msra.mxu0 %v152
  %508 = vmatprep.subr.mxu0 0.0
  %509 = vmatpush1.msra.mxu0 %v151
  %510 = vmatprep.subr.mxu0 0.0
  %511 = vmatpush1.msra.mxu0 %v150
  %512 = vmatprep.subr.mxu0 0.0
  %513 = vmatpush2.msra.mxu0 0.0
  %514 = vmatprep.subr.mxu0 0.0
  %515 = vmatpush2.msra.mxu0 0.0
  %516 = vmatprep.subr.mxu0 0.0
  %517 = vmatpush2.msra.mxu0 0.0
  %518 = vmatprep.subr.mxu0 0.0
  %519 = vmatpush2.msra.mxu0 0.0
  %520 = vmatprep.subr.mxu0 0.0
  %521 = vmatpush2.msra.mxu0 0.0
  %522 = vmatprep.subr.mxu0 0.0
  %523 = vmatpush2.msra.mxu0 0.0
  %524 = vmatprep.subr.mxu0 0.0
  %525 = vmatpush2.msra.mxu0 0.0
  %526 = vmatprep.subr.mxu0 0.0
  %527 = vmatpush2.msra.mxu0 0.0
  %528 = vmatprep.subr.mxu0 0.0
  %529 = vmatpush2.msra.mxu0 0.0
  %530 = vmatprep.subr.mxu0 0.0
  %531 = vmatpush2.msra.mxu0 0.0
  %532 = vmatprep.subr.mxu0 0.0
  %533 = vmatpush2.msra.mxu0 0.0
  %534 = vmatprep.subr.mxu0 0.0
  %535 = vmatpush2.msra.mxu0 0.0
  %536 = vmatprep.subr.mxu0 0.0
  %537 = vmatpush2.msra.mxu0 0.0
  %538 = vmatprep.subr.mxu0 0.0
  %539 = vmatpush2.msra.mxu0 0.0
  %540 = vmatprep.subr.mxu0 0.0
  %541 = vmatpush2.msra.mxu0 0.0
  %542 = vmatprep.subr.mxu0 0.0
  %543 = vmatpush2.msra.mxu0 0.0
  %544 = vmatprep.mubr.f32.mxu0 0.0
  %545 = vmatmul.mubr.f32.gmra.mxu0 %v478
  %v546 = vpop.f32.mrf.mxu0
  %v547 = vadd.f32 0.0, %v546
  %v548 = vpop.f32.mrf.mxu0
  %549 = vdwg.mxu0
  %v551 = vrot.slane %v547, 4
  %v553 = vadd.f32 %v143, %v551
  %v554 = vxor.u32 %v553, 2147483648
  %v555 = vmul.f32 %v554, 1.442695
  %v556 = vpow.pop %v555
  %v557 = vadd.f32 %v556, 1.0
  %v558 = vrcp.pop %v557
  %v559 = vmul.f32 1.0, %v558
  %v560 = vmul.f32 %v559, 2.0
  %v561 = vsub.f32 %v560, 1.0
  %v563 = vrot.slane %v466, 4
  %v565 = vmul.f32 %v559, %v563
  %567 = vrot.lane.b32.xlu0 %v561, 64
  %v568 = vpop.permute.xlu0 %567
  %v570 = vmul.f32 %v559, %v568
  %572 = vrot.lane.b32.xlu0 %v570, 32
  %v573 = vpop.permute.xlu0 %572
  %v575 = vadd.f32 %v565, %v573
  %v576 = vtanh.pop %v575
  %578 = vrot.lane.b32.xlu0 %v576, 64
  %v579 = vpop.permute.xlu0 %578
  %v581 = vmul.f32 %v559, %v579
  %583 = vrot.lane.b32.xlu0 %v581, 32
  %v584 = vpop.permute.xlu0 %583
  %586 = vst.msk [vmem:[#allocation2 + $0x8] sm:$0xf0] %vm367, %v584
  %v587 = vrot.slane %v581, 4
  %588 = vrot.lane.b32.xlu0 %v587, 32
  %v589 = vpop.permute.xlu0 %588
  %v590 = vsel %vm38, %v589, 0
  %592 = vmatprep.subr.mxu0 0.0
  %593 = vmatpush1.msra.mxu0 0.0
  %594 = vmatprep.subr.mxu0 0.0
  %595 = vmatpush1.msra.mxu0 0.0
  %596 = vmatprep.subr.mxu0 0.0
  %597 = vmatpush1.msra.mxu0 0.0
  %598 = vmatprep.subr.mxu0 0.0
  %599 = vmatpush1.msra.mxu0 0.0
  %600 = vmatprep.subr.mxu0 0.0
  %601 = vmatpush1.msra.mxu0 0.0
  %602 = vmatprep.subr.mxu0 0.0
  %603 = vmatpush1.msra.mxu0 0.0
  %604 = vmatprep.subr.mxu0 0.0
  %605 = vmatpush1.msra.mxu0 0.0
  %606 = vmatprep.subr.mxu0 0.0
  %607 = vmatpush1.msra.mxu0 0.0
  %608 = vmatprep.subr.mxu0 0.0
  %609 = vmatpush1.msra.mxu0 0.0
  %610 = vmatprep.subr.mxu0 0.0
  %611 = vmatpush1.msra.mxu0 0.0
  %612 = vmatprep.subr.mxu0 0.0
  %613 = vmatpush1.msra.mxu0 0.0
  %614 = vmatprep.subr.mxu0 0.0
  %615 = vmatpush1.msra.mxu0 0.0
  %616 = vmatprep.subr.mxu0 0.0
  %617 = vmatpush1.msra.mxu0 %v153
  %618 = vmatprep.subr.mxu0 0.0
  %619 = vmatpush1.msra.mxu0 %v152
  %620 = vmatprep.subr.mxu0 0.0
  %621 = vmatpush1.msra.mxu0 %v151
  %622 = vmatprep.subr.mxu0 0.0
  %623 = vmatpush1.msra.mxu0 %v150
  %624 = vmatprep.subr.mxu0 0.0
  %625 = vmatpush2.msra.mxu0 0.0
  %626 = vmatprep.subr.mxu0 0.0
  %627 = vmatpush2.msra.mxu0 0.0
  %628 = vmatprep.subr.mxu0 0.0
  %629 = vmatpush2.msra.mxu0 0.0
  %630 = vmatprep.subr.mxu0 0.0
  %631 = vmatpush2.msra.mxu0 0.0
  %632 = vmatprep.subr.mxu0 0.0
  %633 = vmatpush2.msra.mxu0 0.0
  %634 = vmatprep.subr.mxu0 0.0
  %635 = vmatpush2.msra.mxu0 0.0
  %636 = vmatprep.subr.mxu0 0.0
  %637 = vmatpush2.msra.mxu0 0.0
  %638 = vmatprep.subr.mxu0 0.0
  %639 = vmatpush2.msra.mxu0 0.0
  %640 = vmatprep.subr.mxu0 0.0
  %641 = vmatpush2.msra.mxu0 0.0
  %642 = vmatprep.subr.mxu0 0.0
  %643 = vmatpush2.msra.mxu0 0.0
  %644 = vmatprep.subr.mxu0 0.0
  %645 = vmatpush2.msra.mxu0 0.0
  %646 = vmatprep.subr.mxu0 0.0
  %647 = vmatpush2.msra.mxu0 0.0
  %648 = vmatprep.subr.mxu0 0.0
  %649 = vmatpush2.msra.mxu0 0.0
  %650 = vmatprep.subr.mxu0 0.0
  %651 = vmatpush2.msra.mxu0 0.0
  %652 = vmatprep.subr.mxu0 0.0
  %653 = vmatpush2.msra.mxu0 0.0
  %654 = vmatprep.subr.mxu0 0.0
  %655 = vmatpush2.msra.mxu0 0.0
  %656 = vmatprep.mubr.f32.mxu0 0.0
  %657 = vmatmul.mubr.f32.gmra.mxu0 %v590
  %v658 = vpop.f32.mrf.mxu0
  %v659 = vadd.f32 0.0, %v658
  %v660 = vpop.f32.mrf.mxu0
  %661 = vdwg.mxu0
  %v662 = vadd.f32 %v144, %v659
  %v663 = vxor.u32 %v662, 2147483648
  %v664 = vmul.f32 %v663, 1.442695
  %v665 = vpow.pop %v664
  %v666 = vadd.f32 %v665, 1.0
  %v667 = vrcp.pop %v666
  %v668 = vmul.f32 1.0, %v667
  %v669 = vmul.f32 %v668, 2.0
  %v670 = vsub.f32 %v669, 1.0
  %v672 = vrot.slane %v575, 4
  %v674 = vmul.f32 %v668, %v672
  %676 = vrot.lane.b32.xlu0 %v670, 64
  %v677 = vpop.permute.xlu0 %676
  %v679 = vmul.f32 %v668, %v677
  %681 = vrot.lane.b32.xlu0 %v679, 32
  %v682 = vpop.permute.xlu0 %681
  %v684 = vadd.f32 %v674, %v682
  %v685 = vtanh.pop %v684
  %687 = vrot.lane.b32.xlu0 %v685, 64
  %v688 = vpop.permute.xlu0 %687
  %v690 = vmul.f32 %v668, %v688
  %692 = vrot.lane.b32.xlu0 %v690, 32
  %v693 = vpop.permute.xlu0 %692
  %695 = vst.msk [vmem:[#allocation2 + $0x10] sm:$0xf] %vm257, %v693
  %v696 = vsel %vm38, %v693, 0
  %698 = vmatprep.subr.mxu0 0.0
  %699 = vmatpush1.msra.mxu0 0.0
  %700 = vmatprep.subr.mxu0 0.0
  %701 = vmatpush1.msra.mxu0 0.0
  %702 = vmatprep.subr.mxu0 0.0
  %703 = vmatpush1.msra.mxu0 0.0
  %704 = vmatprep.subr.mxu0 0.0
  %705 = vmatpush1.msra.mxu0 0.0
  %706 = vmatprep.subr.mxu0 0.0
  %707 = vmatpush1.msra.mxu0 0.0
  %708 = vmatprep.subr.mxu0 0.0
  %709 = vmatpush1.msra.mxu0 0.0
  %710 = vmatprep.subr.mxu0 0.0
  %711 = vmatpush1.msra.mxu0 0.0
  %712 = vmatprep.subr.mxu0 0.0
  %713 = vmatpush1.msra.mxu0 0.0
  %714 = vmatprep.subr.mxu0 0.0
  %715 = vmatpush1.msra.mxu0 0.0
  %716 = vmatprep.subr.mxu0 0.0
  %717 = vmatpush1.msra.mxu0 0.0
  %718 = vmatprep.subr.mxu0 0.0
  %719 = vmatpush1.msra.mxu0 0.0
  %720 = vmatprep.subr.mxu0 0.0
  %721 = vmatpush1.msra.mxu0 0.0
  %722 = vmatprep.subr.mxu0 0.0
  %723 = vmatpush1.msra.mxu0 %v153
  %724 = vmatprep.subr.mxu0 0.0
  %725 = vmatpush1.msra.mxu0 %v152
  %726 = vmatprep.subr.mxu0 0.0
  %727 = vmatpush1.msra.mxu0 %v151
  %728 = vmatprep.subr.mxu0 0.0
  %729 = vmatpush1.msra.mxu0 %v150
  %730 = vmatprep.subr.mxu0 0.0
  %731 = vmatpush2.msra.mxu0 0.0
  %732 = vmatprep.subr.mxu0 0.0
  %733 = vmatpush2.msra.mxu0 0.0
  %734 = vmatprep.subr.mxu0 0.0
  %735 = vmatpush2.msra.mxu0 0.0
  %736 = vmatprep.subr.mxu0 0.0
  %737 = vmatpush2.msra.mxu0 0.0
  %738 = vmatprep.subr.mxu0 0.0
  %739 = vmatpush2.msra.mxu0 0.0
  %740 = vmatprep.subr.mxu0 0.0
  %741 = vmatpush2.msra.mxu0 0.0
  %742 = vmatprep.subr.mxu0 0.0
  %743 = vmatpush2.msra.mxu0 0.0
  %744 = vmatprep.subr.mxu0 0.0
  %745 = vmatpush2.msra.mxu0 0.0
  %746 = vmatprep.subr.mxu0 0.0
  %747 = vmatpush2.msra.mxu0 0.0
  %748 = vmatprep.subr.mxu0 0.0
  %749 = vmatpush2.msra.mxu0 0.0
  %750 = vmatprep.subr.mxu0 0.0
  %751 = vmatpush2.msra.mxu0 0.0
  %752 = vmatprep.subr.mxu0 0.0
  %753 = vmatpush2.msra.mxu0 0.0
  %754 = vmatprep.subr.mxu0 0.0
  %755 = vmatpush2.msra.mxu0 0.0
  %756 = vmatprep.subr.mxu0 0.0
  %757 = vmatpush2.msra.mxu0 0.0
  %758 = vmatprep.subr.mxu0 0.0
  %759 = vmatpush2.msra.mxu0 0.0
  %760 = vmatprep.subr.mxu0 0.0
  %761 = vmatpush2.msra.mxu0 0.0
  %762 = vmatprep.mubr.f32.mxu0 0.0
  %763 = vmatmul.mubr.f32.gmra.mxu0 %v696
  %v764 = vpop.f32.mrf.mxu0
  %v765 = vadd.f32 0.0, %v764
  %v766 = vpop.f32.mrf.mxu0
  %767 = vdwg.mxu0
  %v769 = vrot.slane %v765, 4
  %v771 = vadd.f32 %v144, %v769
  %v772 = vxor.u32 %v771, 2147483648
  %v773 = vmul.f32 %v772, 1.442695
  %v774 = vpow.pop %v773
  %v775 = vadd.f32 %v774, 1.0
  %v776 = vrcp.pop %v775
  %v777 = vmul.f32 1.0, %v776
  %v778 = vmul.f32 %v777, 2.0
  %v779 = vsub.f32 %v778, 1.0
  %v781 = vrot.slane %v684, 4
  %v783 = vmul.f32 %v777, %v781
  %785 = vrot.lane.b32.xlu0 %v779, 64
  %v786 = vpop.permute.xlu0 %785
  %v788 = vmul.f32 %v777, %v786
  %790 = vrot.lane.b32.xlu0 %v788, 32
  %v791 = vpop.permute.xlu0 %790
  %v793 = vadd.f32 %v783, %v791
  %v794 = vtanh.pop %v793
  %796 = vrot.lane.b32.xlu0 %v794, 64
  %v797 = vpop.permute.xlu0 %796
  %v799 = vmul.f32 %v777, %v797
  %801 = vrot.lane.b32.xlu0 %v799, 32
  %v802 = vpop.permute.xlu0 %801
  %804 = vst.msk [vmem:[#allocation2 + $0x10] sm:$0xf0] %vm367, %v802
  %v805 = vrot.slane %v799, 4
  %806 = vrot.lane.b32.xlu0 %v805, 32
  %v807 = vpop.permute.xlu0 %806
  %v808 = vsel %vm38, %v807, 0
  %810 = vmatprep.subr.mxu0 0.0
  %811 = vmatpush1.msra.mxu0 0.0
  %812 = vmatprep.subr.mxu0 0.0
  %813 = vmatpush1.msra.mxu0 0.0
  %814 = vmatprep.subr.mxu0 0.0
  %815 = vmatpush1.msra.mxu0 0.0
  %816 = vmatprep.subr.mxu0 0.0
  %817 = vmatpush1.msra.mxu0 0.0
  %818 = vmatprep.subr.mxu0 0.0
  %819 = vmatpush1.msra.mxu0 0.0
  %820 = vmatprep.subr.mxu0 0.0
  %821 = vmatpush1.msra.mxu0 0.0
  %822 = vmatprep.subr.mxu0 0.0
  %823 = vmatpush1.msra.mxu0 0.0
  %824 = vmatprep.subr.mxu0 0.0
  %825 = vmatpush1.msra.mxu0 0.0
  %826 = vmatprep.subr.mxu0 0.0
  %827 = vmatpush1.msra.mxu0 0.0
  %828 = vmatprep.subr.mxu0 0.0
  %829 = vmatpush1.msra.mxu0 0.0
  %830 = vmatprep.subr.mxu0 0.0
  %831 = vmatpush1.msra.mxu0 0.0
  %832 = vmatprep.subr.mxu0 0.0
  %833 = vmatpush1.msra.mxu0 0.0
  %834 = vmatprep.subr.mxu0 0.0
  %835 = vmatpush1.msra.mxu0 %v153
  %836 = vmatprep.subr.mxu0 0.0
  %837 = vmatpush1.msra.mxu0 %v152
  %838 = vmatprep.subr.mxu0 0.0
  %839 = vmatpush1.msra.mxu0 %v151
  %840 = vmatprep.subr.mxu0 0.0
  %841 = vmatpush1.msra.mxu0 %v150
  %842 = vmatprep.subr.mxu0 0.0
  %843 = vmatpush2.msra.mxu0 0.0
  %844 = vmatprep.subr.mxu0 0.0
  %845 = vmatpush2.msra.mxu0 0.0
  %846 = vmatprep.subr.mxu0 0.0
  %847 = vmatpush2.msra.mxu0 0.0
  %848 = vmatprep.subr.mxu0 0.0
  %849 = vmatpush2.msra.mxu0 0.0
  %850 = vmatprep.subr.mxu0 0.0
  %851 = vmatpush2.msra.mxu0 0.0
  %852 = vmatprep.subr.mxu0 0.0
  %853 = vmatpush2.msra.mxu0 0.0
  %854 = vmatprep.subr.mxu0 0.0
  %855 = vmatpush2.msra.mxu0 0.0
  %856 = vmatprep.subr.mxu0 0.0
  %857 = vmatpush2.msra.mxu0 0.0
  %858 = vmatprep.subr.mxu0 0.0
  %859 = vmatpush2.msra.mxu0 0.0
  %860 = vmatprep.subr.mxu0 0.0
  %861 = vmatpush2.msra.mxu0 0.0
  %862 = vmatprep.subr.mxu0 0.0
  %863 = vmatpush2.msra.mxu0 0.0
  %864 = vmatprep.subr.mxu0 0.0
  %865 = vmatpush2.msra.mxu0 0.0
  %866 = vmatprep.subr.mxu0 0.0
  %867 = vmatpush2.msra.mxu0 0.0
  %868 = vmatprep.subr.mxu0 0.0
  %869 = vmatpush2.msra.mxu0 0.0
  %870 = vmatprep.subr.mxu0 0.0
  %871 = vmatpush2.msra.mxu0 0.0
  %872 = vmatprep.subr.mxu0 0.0
  %873 = vmatpush2.msra.mxu0 0.0
  %874 = vmatprep.mubr.f32.mxu0 0.0
  %875 = vmatmul.mubr.f32.gmra.mxu0 %v808
  %v876 = vpop.f32.mrf.mxu0
  %v877 = vadd.f32 0.0, %v876
  %v878 = vpop.f32.mrf.mxu0
  %879 = vdwg.mxu0
  %v880 = vadd.f32 %v145, %v877
  %v881 = vxor.u32 %v880, 2147483648
  %v882 = vmul.f32 %v881, 1.442695
  %v883 = vpow.pop %v882
  %v884 = vadd.f32 %v883, 1.0
  %v885 = vrcp.pop %v884
  %v886 = vmul.f32 1.0, %v885
  %v887 = vmul.f32 %v886, 2.0
  %v888 = vsub.f32 %v887, 1.0
  %v890 = vrot.slane %v793, 4
  %v892 = vmul.f32 %v886, %v890
  %894 = vrot.lane.b32.xlu0 %v888, 64
  %v895 = vpop.permute.xlu0 %894
  %v897 = vmul.f32 %v886, %v895
  %899 = vrot.lane.b32.xlu0 %v897, 32
  %v900 = vpop.permute.xlu0 %899
  %v902 = vadd.f32 %v892, %v900
  %v903 = vtanh.pop %v902
  %905 = vrot.lane.b32.xlu0 %v903, 64
  %v906 = vpop.permute.xlu0 %905
  %v908 = vmul.f32 %v886, %v906
  %910 = vrot.lane.b32.xlu0 %v908, 32
  %v911 = vpop.permute.xlu0 %910
  %913 = vst.msk [vmem:[#allocation2 + $0x18] sm:$0xf] %vm257, %v911
  %v914 = vsel %vm38, %v911, 0
  %916 = vmatprep.subr.mxu0 0.0
  %917 = vmatpush1.msra.mxu0 0.0
  %918 = vmatprep.subr.mxu0 0.0
  %919 = vmatpush1.msra.mxu0 0.0
  %920 = vmatprep.subr.mxu0 0.0
  %921 = vmatpush1.msra.mxu0 0.0
  %922 = vmatprep.subr.mxu0 0.0
  %923 = vmatpush1.msra.mxu0 0.0
  %924 = vmatprep.subr.mxu0 0.0
  %925 = vmatpush1.msra.mxu0 0.0
  %926 = vmatprep.subr.mxu0 0.0
  %927 = vmatpush1.msra.mxu0 0.0
  %928 = vmatprep.subr.mxu0 0.0
  %929 = vmatpush1.msra.mxu0 0.0
  %930 = vmatprep.subr.mxu0 0.0
  %931 = vmatpush1.msra.mxu0 0.0
  %932 = vmatprep.subr.mxu0 0.0
  %933 = vmatpush1.msra.mxu0 0.0
  %934 = vmatprep.subr.mxu0 0.0
  %935 = vmatpush1.msra.mxu0 0.0
  %936 = vmatprep.subr.mxu0 0.0
  %937 = vmatpush1.msra.mxu0 0.0
  %938 = vmatprep.subr.mxu0 0.0
  %939 = vmatpush1.msra.mxu0 0.0
  %940 = vmatprep.subr.mxu0 0.0
  %941 = vmatpush1.msra.mxu0 %v153
  %942 = vmatprep.subr.mxu0 0.0
  %943 = vmatpush1.msra.mxu0 %v152
  %944 = vmatprep.subr.mxu0 0.0
  %945 = vmatpush1.msra.mxu0 %v151
  %946 = vmatprep.subr.mxu0 0.0
  %947 = vmatpush1.msra.mxu0 %v150
  %948 = vmatprep.subr.mxu0 0.0
  %949 = vmatpush2.msra.mxu0 0.0
  %950 = vmatprep.subr.mxu0 0.0
  %951 = vmatpush2.msra.mxu0 0.0
  %952 = vmatprep.subr.mxu0 0.0
  %953 = vmatpush2.msra.mxu0 0.0
  %954 = vmatprep.subr.mxu0 0.0
  %955 = vmatpush2.msra.mxu0 0.0
  %956 = vmatprep.subr.mxu0 0.0
  %957 = vmatpush2.msra.mxu0 0.0
  %958 = vmatprep.subr.mxu0 0.0
  %959 = vmatpush2.msra.mxu0 0.0
  %960 = vmatprep.subr.mxu0 0.0
  %961 = vmatpush2.msra.mxu0 0.0
  %962 = vmatprep.subr.mxu0 0.0
  %963 = vmatpush2.msra.mxu0 0.0
  %964 = vmatprep.subr.mxu0 0.0
  %965 = vmatpush2.msra.mxu0 0.0
  %966 = vmatprep.subr.mxu0 0.0
  %967 = vmatpush2.msra.mxu0 0.0
  %968 = vmatprep.subr.mxu0 0.0
  %969 = vmatpush2.msra.mxu0 0.0
  %970 = vmatprep.subr.mxu0 0.0
  %971 = vmatpush2.msra.mxu0 0.0
  %972 = vmatprep.subr.mxu0 0.0
  %973 = vmatpush2.msra.mxu0 0.0
  %974 = vmatprep.subr.mxu0 0.0
  %975 = vmatpush2.msra.mxu0 0.0
  %976 = vmatprep.subr.mxu0 0.0
  %977 = vmatpush2.msra.mxu0 0.0
  %978 = vmatprep.subr.mxu0 0.0
  %979 = vmatpush2.msra.mxu0 0.0
  %980 = vmatprep.mubr.f32.mxu0 0.0
  %981 = vmatmul.mubr.f32.gmra.mxu0 %v914
  %v982 = vpop.f32.mrf.mxu0
  %v983 = vadd.f32 0.0, %v982
  %v984 = vpop.f32.mrf.mxu0
  %985 = vdwg.mxu0
  %v987 = vrot.slane %v983, 4
  %v989 = vadd.f32 %v145, %v987
  %v990 = vxor.u32 %v989, 2147483648
  %v991 = vmul.f32 %v990, 1.442695
  %v992 = vpow.pop %v991
  %v993 = vadd.f32 %v992, 1.0
  %v994 = vrcp.pop %v993
  %v995 = vmul.f32 1.0, %v994
  %v996 = vmul.f32 %v995, 2.0
  %v997 = vsub.f32 %v996, 1.0
  %v999 = vrot.slane %v902, 4
  %v1001 = vmul.f32 %v995, %v999
  %1003 = vrot.lane.b32.xlu0 %v997, 64
  %v1004 = vpop.permute.xlu0 %1003
  %v1006 = vmul.f32 %v995, %v1004
  %1008 = vrot.lane.b32.xlu0 %v1006, 32
  %v1009 = vpop.permute.xlu0 %1008
  %v1011 = vadd.f32 %v1001, %v1009
  %v1012 = vtanh.pop %v1011
  %1014 = vrot.lane.b32.xlu0 %v1012, 64
  %v1015 = vpop.permute.xlu0 %1014
  %v1017 = vmul.f32 %v995, %v1015
  %1019 = vrot.lane.b32.xlu0 %v1017, 32
  %v1020 = vpop.permute.xlu0 %1019
  %1022 = vst.msk [vmem:[#allocation2 + $0x18] sm:$0xf0] %vm367, %v1020
  %v1023 = vld [vmem:[#allocation2] sm:$0xff]
  %v1024 = vld [vmem:[#allocation2 + $0x8] sm:$0xff]
  %v1025 = vld [vmem:[#allocation2 + $0x10] sm:$0xff]
  %v1026 = vld [vmem:[#allocation2 + $0x18] sm:$0xff]
  %v1027 = vld [vmem:[%s4] sm:$0xff]
  %v1028 = vld [vmem:[%s4 + $0x8] sm:$0xff]
  %v1029 = vld [vmem:[%s4 + $0x10] sm:$0xff]
  %v1030 = vld [vmem:[%s4 + $0x18] sm:$0xff]
  %v1031 = vld [vmem:[%s5] sm:$0x1]
  %v1033 = vlaneseq
  %v1034 = vshrl.u32 %v1033, 7
  %v1035 = vsub.s32 0, %v1034
  %v1036 = vrot.slane %v1031, %v1035
  %v1039 = vsel %vm38, %v1023, 0
  %v1042 = vsel %vm38, %v1024, 0
  %v1045 = vsel %vm38, %v1025, 0
  %v1048 = vsel %vm38, %v1026, 0
  %1050 = vmatprep.subr.mxu0 0.0
  %1051 = vmatpush1.msra.mxu0 0.0
  %1052 = vmatprep.subr.mxu0 0.0
  %1053 = vmatpush1.msra.mxu0 0.0
  %1054 = vmatprep.subr.mxu0 0.0
  %1055 = vmatpush1.msra.mxu0 0.0
  %1056 = vmatprep.subr.mxu0 0.0
  %1057 = vmatpush1.msra.mxu0 0.0
  %1058 = vmatprep.subr.mxu0 0.0
  %1059 = vmatpush1.msra.mxu0 0.0
  %1060 = vmatprep.subr.mxu0 0.0
  %1061 = vmatpush1.msra.mxu0 0.0
  %1062 = vmatprep.subr.mxu0 0.0
  %1063 = vmatpush1.msra.mxu0 0.0
  %1064 = vmatprep.subr.mxu0 0.0
  %1065 = vmatpush1.msra.mxu0 0.0
  %1066 = vmatprep.subr.mxu0 0.0
  %1067 = vmatpush1.msra.mxu0 0.0
  %1068 = vmatprep.subr.mxu0 0.0
  %1069 = vmatpush1.msra.mxu0 0.0
  %1070 = vmatprep.subr.mxu0 0.0
  %1071 = vmatpush1.msra.mxu0 0.0
  %1072 = vmatprep.subr.mxu0 0.0
  %1073 = vmatpush1.msra.mxu0 0.0
  %1074 = vmatprep.subr.mxu0 0.0
  %1075 = vmatpush1.msra.mxu0 %v1030
  %1076 = vmatprep.subr.mxu0 0.0
  %1077 = vmatpush1.msra.mxu0 %v1029
  %1078 = vmatprep.subr.mxu0 0.0
  %1079 = vmatpush1.msra.mxu0 %v1028
  %1080 = vmatprep.subr.mxu0 0.0
  %1081 = vmatpush1.msra.mxu0 %v1027
  %1082 = vmatprep.subr.mxu0 0.0
  %1083 = vmatpush2.msra.mxu0 0.0
  %1084 = vmatprep.subr.mxu0 0.0
  %1085 = vmatpush2.msra.mxu0 0.0
  %1086 = vmatprep.subr.mxu0 0.0
  %1087 = vmatpush2.msra.mxu0 0.0
  %1088 = vmatprep.subr.mxu0 0.0
  %1089 = vmatpush2.msra.mxu0 0.0
  %1090 = vmatprep.subr.mxu0 0.0
  %1091 = vmatpush2.msra.mxu0 0.0
  %1092 = vmatprep.subr.mxu0 0.0
  %1093 = vmatpush2.msra.mxu0 0.0
  %1094 = vmatprep.subr.mxu0 0.0
  %1095 = vmatpush2.msra.mxu0 0.0
  %1096 = vmatprep.subr.mxu0 0.0
  %1097 = vmatpush2.msra.mxu0 0.0
  %1098 = vmatprep.subr.mxu0 0.0
  %1099 = vmatpush2.msra.mxu0 0.0
  %1100 = vmatprep.subr.mxu0 0.0
  %1101 = vmatpush2.msra.mxu0 0.0
  %1102 = vmatprep.subr.mxu0 0.0
  %1103 = vmatpush2.msra.mxu0 0.0
  %1104 = vmatprep.subr.mxu0 0.0
  %1105 = vmatpush2.msra.mxu0 0.0
  %1106 = vmatprep.subr.mxu0 0.0
  %1107 = vmatpush2.msra.mxu0 0.0
  %1108 = vmatprep.subr.mxu0 0.0
  %1109 = vmatpush2.msra.mxu0 0.0
  %1110 = vmatprep.subr.mxu0 0.0
  %1111 = vmatpush2.msra.mxu0 0.0
  %1112 = vmatprep.subr.mxu0 0.0
  %1113 = vmatpush2.msra.mxu0 0.0
  %1114 = vmatprep.mubr.f32.mxu0 0.0
  %1115 = vmatmul.mubr.f32.gmra.mxu0 %v1039
  %v1116 = vpop.f32.mrf.mxu0
  %v1117 = vadd.f32 %v1036, %v1116
  %v1118 = vpop.f32.mrf.mxu0
  %1119 = vmatprep.mubr.f32.mxu0 0.0
  %1120 = vmatmul.mubr.f32.gmra.mxu0 %v1042
  %v1121 = vpop.f32.mrf.mxu0
  %v1122 = vadd.f32 %v1036, %v1121
  %v1123 = vpop.f32.mrf.mxu0
  %1124 = vmatprep.mubr.f32.mxu0 0.0
  %1125 = vmatmul.mubr.f32.gmra.mxu0 %v1045
  %v1126 = vpop.f32.mrf.mxu0
  %v1127 = vadd.f32 %v1036, %v1126
  %v1128 = vpop.f32.mrf.mxu0
  %1129 = vmatprep.mubr.f32.mxu0 0.0
  %1130 = vmatmul.mubr.f32.gmra.mxu0 %v1048
  %v1131 = vpop.f32.mrf.mxu0
  %v1132 = vadd.f32 %v1036, %v1131
  %v1133 = vpop.f32.mrf.mxu0
  %1134 = vdwg.mxu0
  %1135 = vst [vmem:[%s6] sm:$0xff] %v1117
  %1136 = vst [vmem:[%s6 + $0x8] sm:$0xff] %v1122
  %1137 = vst [vmem:[%s6 + $0x10] sm:$0xff] %v1127
  %1138 = vst [vmem:[%s6 + $0x18] sm:$0xff] %v1132
  // Predicated region
  $region26: #{lstm_simple_forward.1} parent=0 // pred_check
    _
  $region27: #{lstm_simple_forward.1} parent=0 // pred_check_branch
    %1140 = sbr.rel (0) target = $region29
  $region28: #{lstm_simple_forward.1} parent=0 // pred_region
    _
  $region29: #{lstm_simple_forward.1} parent=0 // pred_fallthru
    _
  // Predicated region
  $region30: #{lstm_simple_forward.1} parent=0 // pred_check
    _
  $region31: #{lstm_simple_forward.1} parent=0 // pred_check_branch
    %1142 = sbr.rel (0) target = $region33
  $region32: #{lstm_simple_forward.1} parent=0 // pred_region
    _
  $region33: #{lstm_simple_forward.1} parent=0 // pred_fallthru
    _

</llo_original>
